<compile_context>
chip_gen: v7x
topology: tpu7x:2x2x1
jax: 0.10.0
libtpu: 0.0.40
codegen_flags: <defaults>
</compile_context>

<pallas_src>
import functools

import jax
import jax.numpy as jnp
from jax.experimental import pallas as pl
from jax.experimental.pallas import tpu as pltpu

_F32_MAX = 3.4028235e38  # torch.nan_to_num maps +/-inf to dtype extremes


def _encode_kernel(x_ref, ws_ref, wt_ref, noise_ref, rates_ref, *,
                   batch, t_in, t_out):
    # x_ref     : (B*T, K2)    f32  flattened frames, batch folded into rows
    # ws_ref    : (K2, N)      f32  spatial encoding kernels (pre-transposed)
    # wt_ref    : (L, N)       f32  temporal kernels, tap-major rows
    # noise_ref : (B*T, N)     f32  standard-normal noise
    # rates_ref : (B*T_out, N) f32  softplus firing rates (output)
    xb = x_ref[...].astype(jnp.bfloat16)
    wsb = ws_ref[...].astype(jnp.bfloat16)
    # Spatial encode: single MXU matmul over all B*T frames, f32 accumulation.
    y = jnp.dot(xb, wsb, preferred_element_type=jnp.float32)
    # x + 0.1 * randn_like(x)
    y = y + 0.1 * noise_ref[...]

    wt = wt_ref[...]
    taps = wt.shape[0]
    # Depthwise (grouped) temporal conv, "valid", cross-correlation in time:
    # out[b, t, n] = sum_l y[b, t + l, n] * wt[l, n]
    for b in range(batch):
        base = b * t_in
        acc = y[base:base + t_out, :] * wt[0:1, :]
        for l in range(1, taps):
            acc = acc + y[base + l:base + l + t_out, :] * wt[l:l + 1, :]
        # torch.nan_to_num(x, 1e-06): NaN -> 1e-6, +/-inf -> f32 extremes.
        acc = jnp.where(jnp.isnan(acc), jnp.float32(1e-6), acc)
        acc = jnp.clip(acc, -_F32_MAX, _F32_MAX)
        # softplus (PyTorch defaults beta=1, threshold=20)
        sp = jnp.where(acc > 20.0, acc,
                       jnp.log1p(jnp.exp(jnp.minimum(acc, 20.0))))
        rates_ref[b * t_out:(b + 1) * t_out, :] = sp


def _decode_kernel(rates_ref, pois_ref, wd_ref, dec_ref, x2_ref):
    # rates_ref/pois_ref : (B*T_out, N)  f32
    # wd_ref             : (N, K2)       f32
    # dec_ref            : (B*T_out, K2) f32   (lane-dense: K2 % 128 == 0)
    # x2_ref             : (B*T_out, N)  f32   (encoder output, pre-transpose)
    x2 = rates_ref[...] + pois_ref[...]
    x2_ref[...] = x2
    dec_ref[...] = jnp.dot(x2.astype(jnp.bfloat16),
                           wd_ref[...].astype(jnp.bfloat16),
                           preferred_element_type=jnp.float32)


def encoder_forward(x, spatial_kernels, temporal_kernels, spatial_decoder, key):
    B, T, K, _ = x.shape
    K2 = K * K
    N, L = temporal_kernels.shape
    T_out = T - L + 1
    BT, BTo = B * T, B * T_out

    x2d = x.reshape(BT, K2)
    ws_t = spatial_kernels.T   # (K2, N): natural (M,K)x(K,N) MXU layout
    wt_t = temporal_kernels.T  # (L, N): tap-major rows -> cheap row slicing

    k_noise, k_pois = jax.random.split(key)
    # TODO(synk): torch.randn_like / torch.poisson (data-dependent sampling)
    # have no portable in-kernel Pallas equivalent; the draws are produced
    # with jax.random and fed to / between the kernels (semantics preserved).
    noise = jax.random.normal(k_noise, (BT, N), dtype=jnp.float32)

    encode = functools.partial(_encode_kernel, batch=B, t_in=T, t_out=T_out)
    rates = pl.pallas_call(
        encode,
        out_shape=jax.ShapeDtypeStruct((BTo, N), jnp.float32),
        grid=(1,),
        in_specs=[
            pl.BlockSpec((BT, K2), lambda i: (0, 0)),
            pl.BlockSpec((K2, N), lambda i: (0, 0)),
            pl.BlockSpec((L, N), lambda i: (0, 0)),
            pl.BlockSpec((BT, N), lambda i: (0, 0)),
        ],
        out_specs=pl.BlockSpec((BTo, N), lambda i: (0, 0)),
        compiler_params=pltpu.CompilerParams(
            dimension_semantics=("arbitrary",)),
    )(x2d, ws_t, wt_t, noise)

    pois = jax.random.poisson(k_pois, rates).astype(jnp.float32)

    decoded2d, x2 = pl.pallas_call(
        _decode_kernel,
        out_shape=(jax.ShapeDtypeStruct((BTo, K2), jnp.float32),
                   jax.ShapeDtypeStruct((BTo, N), jnp.float32)),
        grid=(1,),
        in_specs=[
            pl.BlockSpec((BTo, N), lambda i: (0, 0)),
            pl.BlockSpec((BTo, N), lambda i: (0, 0)),
            pl.BlockSpec((N, K2), lambda i: (0, 0)),
        ],
        out_specs=(
            pl.BlockSpec((BTo, K2), lambda i: (0, 0)),
            pl.BlockSpec((BTo, N), lambda i: (0, 0)),
        ),
        compiler_params=pltpu.CompilerParams(
            dimension_semantics=("arbitrary",)),
    )(rates, pois, spatial_decoder)

    decoded = decoded2d.reshape(B, T_out, K, K)
    encoder_output = jnp.transpose(x2.reshape(B, T_out, N), (0, 2, 1))
    return decoded, encoder_output


def xavier_normal(key, shape):
    # torch.nn.init.xavier_normal_ on a 2-D param: std = sqrt(2/(fan_in+fan_out))
    fan_out, fan_in = shape
    std = (2.0 / (fan_in + fan_out)) ** 0.5
    return std * jax.random.normal(key, shape, dtype=jnp.float32)


if __name__ == "__main__":
    # Small shapes consistent with the module (spatial_kernel_size=16,
    # temporal_kernel_length=8, n_kernels=32, temporal_pad=(0, 0)).
    K, N, L, B, T = 16, 32, 8, 2, 24
    key = jax.random.PRNGKey(0)
    k1, k2, k3, kx, kf = jax.random.split(key, 5)

    spatial_kernels = xavier_normal(k1, (N, K * K))
    temporal_kernels = xavier_normal(k2, (N, L))
    spatial_decoder = xavier_normal(k3, (N, K * K))

    x = jax.random.normal(kx, (B, T, K, K), dtype=jnp.float32)

    decoded, enc_out = encoder_forward(
        x, spatial_kernels, temporal_kernels, spatial_decoder, kf)
    jax.block_until_ready((decoded, enc_out))

    assert decoded.shape == (B, T - L + 1, K, K), decoded.shape
    assert enc_out.shape == (B, N, T - L + 1), enc_out.shape
    assert bool(jnp.all(jnp.isfinite(decoded)))
    assert bool(jnp.all(enc_out >= 0.0))
    print("KERNEL_OK")
</pallas_src>

<mosaic_0001>
module attributes {stable_mosaic.version = 11 : i64} {
  func.func @_encode_kernel(%arg0: i32, %arg1: memref<48x256xf32, #tpu.memory_space<vmem>>, %arg2: memref<256x32xf32, #tpu.memory_space<vmem>>, %arg3: memref<8x32xf32, #tpu.memory_space<vmem>>, %arg4: memref<48x32xf32, #tpu.memory_space<vmem>>, %arg5: memref<34x32xf32, #tpu.memory_space<vmem>>) attributes {dimension_semantics = [#tpu.dimension_semantics<arbitrary>], iteration_bounds = array<i64: 1>, scalar_prefetch = 0 : i64, scratch_operands = 0 : i64, tpu.core_type = #tpu.core_type<tc>, window_params = [{pipeline_mode = #tpu.pipeline_mode<synchronous>, transform_indices = @transform_0, window_bounds = array<i64: 48, 256>}, {pipeline_mode = #tpu.pipeline_mode<synchronous>, transform_indices = @transform_1, window_bounds = array<i64: 256, 32>}, {pipeline_mode = #tpu.pipeline_mode<synchronous>, transform_indices = @transform_2, window_bounds = array<i64: 8, 32>}, {pipeline_mode = #tpu.pipeline_mode<synchronous>, transform_indices = @transform_3, window_bounds = array<i64: 48, 32>}, {pipeline_mode = #tpu.pipeline_mode<synchronous>, transform_indices = @transform_4, window_bounds = array<i64: 34, 32>}]} {
    %c0 = arith.constant 0 : index
    %c0_0 = arith.constant 0 : index
    %0 = vector.load %arg1[%c0, %c0_0] : memref<48x256xf32, #tpu.memory_space<vmem>>, vector<48x256xf32>
    %1 = arith.truncf %0 : vector<48x256xf32> to vector<48x256xbf16>
    %c0_1 = arith.constant 0 : index
    %c0_2 = arith.constant 0 : index
    %2 = vector.load %arg2[%c0_1, %c0_2] : memref<256x32xf32, #tpu.memory_space<vmem>>, vector<256x32xf32>
    %3 = arith.truncf %2 : vector<256x32xf32> to vector<256x32xbf16>
    %cst = arith.constant dense<0.000000e+00> : vector<48x32xf32>
    %4 = tpu.matmul %1, %3, %cst {dimension_numbers = #tpu.dot_dimension_numbers<[1], [0], [0], [1], [0, 0, 1, 1], [], []>} : vector<48x256xbf16>, vector<256x32xbf16>, vector<48x32xf32> -> vector<48x32xf32>
    %c0_3 = arith.constant 0 : index
    %c0_4 = arith.constant 0 : index
    %5 = vector.load %arg4[%c0_3, %c0_4] : memref<48x32xf32, #tpu.memory_space<vmem>>, vector<48x32xf32>
    %cst_5 = arith.constant 1.000000e-01 : f32
    %6 = vector.broadcast %cst_5 : f32 to vector<48x32xf32>
    %7 = arith.mulf %6, %5 : vector<48x32xf32>
    %8 = arith.addf %4, %7 : vector<48x32xf32>
    %c0_6 = arith.constant 0 : index
    %c0_7 = arith.constant 0 : index
    %9 = vector.load %arg3[%c0_6, %c0_7] : memref<8x32xf32, #tpu.memory_space<vmem>>, vector<8x32xf32>
    %10 = vector.extract_strided_slice %8 {offsets = [0, 0], sizes = [17, 32], strides = [1, 1]} : vector<48x32xf32> to vector<17x32xf32>
    %11 = vector.extract_strided_slice %9 {offsets = [0, 0], sizes = [1, 32], strides = [1, 1]} : vector<8x32xf32> to vector<1x32xf32>
    %12 = vector.broadcast %11 : vector<1x32xf32> to vector<17x32xf32>
    %13 = arith.mulf %10, %12 : vector<17x32xf32>
    %14 = vector.extract_strided_slice %8 {offsets = [1, 0], sizes = [17, 32], strides = [1, 1]} : vector<48x32xf32> to vector<17x32xf32>
    %15 = vector.extract_strided_slice %9 {offsets = [1, 0], sizes = [1, 32], strides = [1, 1]} : vector<8x32xf32> to vector<1x32xf32>
    %16 = vector.broadcast %15 : vector<1x32xf32> to vector<17x32xf32>
    %17 = arith.mulf %14, %16 : vector<17x32xf32>
    %18 = arith.addf %13, %17 : vector<17x32xf32>
    %19 = vector.extract_strided_slice %8 {offsets = [2, 0], sizes = [17, 32], strides = [1, 1]} : vector<48x32xf32> to vector<17x32xf32>
    %20 = vector.extract_strided_slice %9 {offsets = [2, 0], sizes = [1, 32], strides = [1, 1]} : vector<8x32xf32> to vector<1x32xf32>
    %21 = vector.broadcast %20 : vector<1x32xf32> to vector<17x32xf32>
    %22 = arith.mulf %19, %21 : vector<17x32xf32>
    %23 = arith.addf %18, %22 : vector<17x32xf32>
    %24 = vector.extract_strided_slice %8 {offsets = [3, 0], sizes = [17, 32], strides = [1, 1]} : vector<48x32xf32> to vector<17x32xf32>
    %25 = vector.extract_strided_slice %9 {offsets = [3, 0], sizes = [1, 32], strides = [1, 1]} : vector<8x32xf32> to vector<1x32xf32>
    %26 = vector.broadcast %25 : vector<1x32xf32> to vector<17x32xf32>
    %27 = arith.mulf %24, %26 : vector<17x32xf32>
    %28 = arith.addf %23, %27 : vector<17x32xf32>
    %29 = vector.extract_strided_slice %8 {offsets = [4, 0], sizes = [17, 32], strides = [1, 1]} : vector<48x32xf32> to vector<17x32xf32>
    %30 = vector.extract_strided_slice %9 {offsets = [4, 0], sizes = [1, 32], strides = [1, 1]} : vector<8x32xf32> to vector<1x32xf32>
    %31 = vector.broadcast %30 : vector<1x32xf32> to vector<17x32xf32>
    %32 = arith.mulf %29, %31 : vector<17x32xf32>
    %33 = arith.addf %28, %32 : vector<17x32xf32>
    %34 = vector.extract_strided_slice %8 {offsets = [5, 0], sizes = [17, 32], strides = [1, 1]} : vector<48x32xf32> to vector<17x32xf32>
    %35 = vector.extract_strided_slice %9 {offsets = [5, 0], sizes = [1, 32], strides = [1, 1]} : vector<8x32xf32> to vector<1x32xf32>
    %36 = vector.broadcast %35 : vector<1x32xf32> to vector<17x32xf32>
    %37 = arith.mulf %34, %36 : vector<17x32xf32>
    %38 = arith.addf %33, %37 : vector<17x32xf32>
    %39 = vector.extract_strided_slice %8 {offsets = [6, 0], sizes = [17, 32], strides = [1, 1]} : vector<48x32xf32> to vector<17x32xf32>
    %40 = vector.extract_strided_slice %9 {offsets = [6, 0], sizes = [1, 32], strides = [1, 1]} : vector<8x32xf32> to vector<1x32xf32>
    %41 = vector.broadcast %40 : vector<1x32xf32> to vector<17x32xf32>
    %42 = arith.mulf %39, %41 : vector<17x32xf32>
    %43 = arith.addf %38, %42 : vector<17x32xf32>
    %44 = vector.extract_strided_slice %8 {offsets = [7, 0], sizes = [17, 32], strides = [1, 1]} : vector<48x32xf32> to vector<17x32xf32>
    %45 = vector.extract_strided_slice %9 {offsets = [7, 0], sizes = [1, 32], strides = [1, 1]} : vector<8x32xf32> to vector<1x32xf32>
    %46 = vector.broadcast %45 : vector<1x32xf32> to vector<17x32xf32>
    %47 = arith.mulf %44, %46 : vector<17x32xf32>
    %48 = arith.addf %43, %47 : vector<17x32xf32>
    %49 = arith.cmpf one, %48, %48 : vector<17x32xf32>
    %cst_8 = arith.constant 9.99999997E-7 : f32
    %50 = vector.broadcast %cst_8 : f32 to vector<17x32xf32>
    %51 = arith.select %49, %50, %48 : vector<17x32xi1>, vector<17x32xf32>
    %cst_9 = arith.constant -3.40282347E+38 : f32
    %cst_10 = arith.constant 3.40282347E+38 : f32
    %52 = vector.broadcast %cst_9 : f32 to vector<17x32xf32>
    %53 = arith.maximumf %52, %51 : vector<17x32xf32>
    %54 = vector.broadcast %cst_10 : f32 to vector<17x32xf32>
    %55 = arith.minimumf %54, %53 : vector<17x32xf32>
    %cst_11 = arith.constant 2.000000e+01 : f32
    %56 = vector.broadcast %cst_11 : f32 to vector<17x32xf32>
    %57 = arith.cmpf ogt, %55, %56 : vector<17x32xf32>
    %cst_12 = arith.constant 2.000000e+01 : f32
    %58 = vector.broadcast %cst_12 : f32 to vector<17x32xf32>
    %59 = arith.minimumf %55, %58 : vector<17x32xf32>
    %60 = math.exp %59 : vector<17x32xf32>
    %61 = math.log1p %60 : vector<17x32xf32>
    %62 = arith.select %57, %55, %61 : vector<17x32xi1>, vector<17x32xf32>
    %c0_13 = arith.constant 0 : index
    %c0_14 = arith.constant 0 : index
    %63 = vector.load %arg5[%c0_13, %c0_14] : memref<34x32xf32, #tpu.memory_space<vmem>>, vector<17x32xf32>
    tpu.vector_store %arg5[%c0_13, %c0_14], %62 {strides = array<i32>} : memref<34x32xf32, #tpu.memory_space<vmem>>, vector<17x32xf32>,
    %64 = vector.extract_strided_slice %8 {offsets = [24, 0], sizes = [17, 32], strides = [1, 1]} : vector<48x32xf32> to vector<17x32xf32>
    %65 = vector.extract_strided_slice %9 {offsets = [0, 0], sizes = [1, 32], strides = [1, 1]} : vector<8x32xf32> to vector<1x32xf32>
    %66 = vector.broadcast %65 : vector<1x32xf32> to vector<17x32xf32>
    %67 = arith.mulf %64, %66 : vector<17x32xf32>
    %68 = vector.extract_strided_slice %8 {offsets = [25, 0], sizes = [17, 32], strides = [1, 1]} : vector<48x32xf32> to vector<17x32xf32>
    %69 = vector.extract_strided_slice %9 {offsets = [1, 0], sizes = [1, 32], strides = [1, 1]} : vector<8x32xf32> to vector<1x32xf32>
    %70 = vector.broadcast %69 : vector<1x32xf32> to vector<17x32xf32>
    %71 = arith.mulf %68, %70 : vector<17x32xf32>
    %72 = arith.addf %67, %71 : vector<17x32xf32>
    %73 = vector.extract_strided_slice %8 {offsets = [26, 0], sizes = [17, 32], strides = [1, 1]} : vector<48x32xf32> to vector<17x32xf32>
    %74 = vector.extract_strided_slice %9 {offsets = [2, 0], sizes = [1, 32], strides = [1, 1]} : vector<8x32xf32> to vector<1x32xf32>
    %75 = vector.broadcast %74 : vector<1x32xf32> to vector<17x32xf32>
    %76 = arith.mulf %73, %75 : vector<17x32xf32>
    %77 = arith.addf %72, %76 : vector<17x32xf32>
    %78 = vector.extract_strided_slice %8 {offsets = [27, 0], sizes = [17, 32], strides = [1, 1]} : vector<48x32xf32> to vector<17x32xf32>
    %79 = vector.extract_strided_slice %9 {offsets = [3, 0], sizes = [1, 32], strides = [1, 1]} : vector<8x32xf32> to vector<1x32xf32>
    %80 = vector.broadcast %79 : vector<1x32xf32> to vector<17x32xf32>
    %81 = arith.mulf %78, %80 : vector<17x32xf32>
    %82 = arith.addf %77, %81 : vector<17x32xf32>
    %83 = vector.extract_strided_slice %8 {offsets = [28, 0], sizes = [17, 32], strides = [1, 1]} : vector<48x32xf32> to vector<17x32xf32>
    %84 = vector.extract_strided_slice %9 {offsets = [4, 0], sizes = [1, 32], strides = [1, 1]} : vector<8x32xf32> to vector<1x32xf32>
    %85 = vector.broadcast %84 : vector<1x32xf32> to vector<17x32xf32>
    %86 = arith.mulf %83, %85 : vector<17x32xf32>
    %87 = arith.addf %82, %86 : vector<17x32xf32>
    %88 = vector.extract_strided_slice %8 {offsets = [29, 0], sizes = [17, 32], strides = [1, 1]} : vector<48x32xf32> to vector<17x32xf32>
    %89 = vector.extract_strided_slice %9 {offsets = [5, 0], sizes = [1, 32], strides = [1, 1]} : vector<8x32xf32> to vector<1x32xf32>
    %90 = vector.broadcast %89 : vector<1x32xf32> to vector<17x32xf32>
    %91 = arith.mulf %88, %90 : vector<17x32xf32>
    %92 = arith.addf %87, %91 : vector<17x32xf32>
    %93 = vector.extract_strided_slice %8 {offsets = [30, 0], sizes = [17, 32], strides = [1, 1]} : vector<48x32xf32> to vector<17x32xf32>
    %94 = vector.extract_strided_slice %9 {offsets = [6, 0], sizes = [1, 32], strides = [1, 1]} : vector<8x32xf32> to vector<1x32xf32>
    %95 = vector.broadcast %94 : vector<1x32xf32> to vector<17x32xf32>
    %96 = arith.mulf %93, %95 : vector<17x32xf32>
    %97 = arith.addf %92, %96 : vector<17x32xf32>
    %98 = vector.extract_strided_slice %8 {offsets = [31, 0], sizes = [17, 32], strides = [1, 1]} : vector<48x32xf32> to vector<17x32xf32>
    %99 = vector.extract_strided_slice %9 {offsets = [7, 0], sizes = [1, 32], strides = [1, 1]} : vector<8x32xf32> to vector<1x32xf32>
    %100 = vector.broadcast %99 : vector<1x32xf32> to vector<17x32xf32>
    %101 = arith.mulf %98, %100 : vector<17x32xf32>
    %102 = arith.addf %97, %101 : vector<17x32xf32>
    %103 = arith.cmpf one, %102, %102 : vector<17x32xf32>
    %cst_15 = arith.constant 9.99999997E-7 : f32
    %104 = vector.broadcast %cst_15 : f32 to vector<17x32xf32>
    %105 = arith.select %103, %104, %102 : vector<17x32xi1>, vector<17x32xf32>
    %cst_16 = arith.constant -3.40282347E+38 : f32
    %cst_17 = arith.constant 3.40282347E+38 : f32
    %106 = vector.broadcast %cst_16 : f32 to vector<17x32xf32>
    %107 = arith.maximumf %106, %105 : vector<17x32xf32>
    %108 = vector.broadcast %cst_17 : f32 to vector<17x32xf32>
    %109 = arith.minimumf %108, %107 : vector<17x32xf32>
    %cst_18 = arith.constant 2.000000e+01 : f32
    %110 = vector.broadcast %cst_18 : f32 to vector<17x32xf32>
    %111 = arith.cmpf ogt, %109, %110 : vector<17x32xf32>
    %cst_19 = arith.constant 2.000000e+01 : f32
    %112 = vector.broadcast %cst_19 : f32 to vector<17x32xf32>
    %113 = arith.minimumf %109, %112 : vector<17x32xf32>
    %114 = math.exp %113 : vector<17x32xf32>
    %115 = math.log1p %114 : vector<17x32xf32>
    %116 = arith.select %111, %109, %115 : vector<17x32xi1>, vector<17x32xf32>
    %c17 = arith.constant 17 : index
    %c0_20 = arith.constant 0 : index
    %117 = vector.load %arg5[%c17, %c0_20] : memref<34x32xf32, #tpu.memory_space<vmem>>, vector<17x32xf32>
    tpu.vector_store %arg5[%c17, %c0_20], %116 {strides = array<i32>} : memref<34x32xf32, #tpu.memory_space<vmem>>, vector<17x32xf32>,
    return
  }
  func.func @transform_0(%arg0: i32) -> (i32, i32) {
    %c0_i32 = arith.constant 0 : i32
    %c0_i32_0 = arith.constant 0 : i32
    %c0_i32_1 = arith.constant 0 : i32
    return %c0_i32, %c0_i32_0 : i32, i32
  }
  func.func @transform_1(%arg0: i32) -> (i32, i32) {
    %c0_i32 = arith.constant 0 : i32
    %c0_i32_0 = arith.constant 0 : i32
    %c0_i32_1 = arith.constant 0 : i32
    return %c0_i32, %c0_i32_0 : i32, i32
  }
  func.func @transform_2(%arg0: i32) -> (i32, i32) {
    %c0_i32 = arith.constant 0 : i32
    %c0_i32_0 = arith.constant 0 : i32
    %c0_i32_1 = arith.constant 0 : i32
    return %c0_i32, %c0_i32_0 : i32, i32
  }
  func.func @transform_3(%arg0: i32) -> (i32, i32) {
    %c0_i32 = arith.constant 0 : i32
    %c0_i32_0 = arith.constant 0 : i32
    %c0_i32_1 = arith.constant 0 : i32
    return %c0_i32, %c0_i32_0 : i32, i32
  }
  func.func @transform_4(%arg0: i32) -> (i32, i32) {
    %c0_i32 = arith.constant 0 : i32
    %c0_i32_0 = arith.constant 0 : i32
    %c0_i32_1 = arith.constant 0 : i32
    return %c0_i32, %c0_i32_0 : i32, i32
  }
}

</mosaic_0001>

<llo_original>
// kernel: tpu_custom_call.1
$region0: #{tpu_custom_call.1}
  #allocation0 [shape = 'u32[]', space=smem, size = 0x4, offset = 0x4, fixed_abs, tag = 'smem constant byte address 0x4 - core index']
  #allocation1 [shape = 'u32[144,128]{1,0:T(1,128)}', space=vmem, size = 0x12000, scoped, tag = 'internal scratch']
  %s0 = inlined_call_operand.vmem [shape: f32[48,256], index: 0, kind: input, shape index: {}]
  %s1 = inlined_call_operand.vmem [shape: f32[256,32], index: 1, kind: input, shape index: {}]
  %s2 = inlined_call_operand.vmem [shape: f32[8,32], index: 2, kind: input, shape index: {}]
  %s3 = inlined_call_operand.vmem [shape: f32[48,32], index: 3, kind: input, shape index: {}]
  %s4 = inlined_call_operand.vmem [shape: f32[34,32], index: 4, kind: output, shape index: {}]
  %s5 = sld [smem:[#allocation0]]
  $region26: #{tpu_custom_call.1} parent=0
    _
  %s7 = ssub.s32 1, %s5
  %s8 = scalar_select 0, %s7, %s5
  // Predicated region
  $region2: #{tpu_custom_call.1} parent=0 // pred_check
    _
  $region3: #{tpu_custom_call.1} parent=0 // pred_check_branch
    %10 = sbr.rel (0) target = $region5
  $region4: #{tpu_custom_call.1} parent=0 // pred_region
    _
  $region5: #{tpu_custom_call.1} parent=0 // pred_fallthru
    _
  // Predicated region
  $region6: #{tpu_custom_call.1} parent=0 // pred_check
    _
  $region7: #{tpu_custom_call.1} parent=0 // pred_check_branch
    %12 = sbr.rel (0) target = $region9
  $region8: #{tpu_custom_call.1} parent=0 // pred_region
    _
  $region9: #{tpu_custom_call.1} parent=0 // pred_fallthru
    _
  // Predicated region
  $region10: #{tpu_custom_call.1} parent=0 // pred_check
    _
  $region11: #{tpu_custom_call.1} parent=0 // pred_check_branch
    %14 = sbr.rel (0) target = $region13
  $region12: #{tpu_custom_call.1} parent=0 // pred_region
    _
  $region13: #{tpu_custom_call.1} parent=0 // pred_fallthru
    _
  // Predicated region
  $region14: #{tpu_custom_call.1} parent=0 // pred_check
    _
  $region15: #{tpu_custom_call.1} parent=0 // pred_check_branch
    %16 = sbr.rel (0) target = $region17
  $region16: #{tpu_custom_call.1} parent=0 // pred_region
    _
  $region17: #{tpu_custom_call.1} parent=0 // pred_fallthru
    _
  %v18 = vld [vmem:[%s0] sm:$0xff]
  %v19 = vld [vmem:[%s0 + $0x8] sm:$0xff]
  %v20 = vld [vmem:[%s0 + $0x10] sm:$0xff]
  %v21 = vld [vmem:[%s0 + $0x18] sm:$0xff]
  %v22 = vld [vmem:[%s0 + $0x20] sm:$0xff]
  %v23 = vld [vmem:[%s0 + $0x28] sm:$0xff]
  %v24 = vld [vmem:[%s0 + $0x30] sm:$0xff]
  %v25 = vld [vmem:[%s0 + $0x38] sm:$0xff]
  %v26 = vld [vmem:[%s0 + $0x40] sm:$0xff]
  %v27 = vld [vmem:[%s0 + $0x48] sm:$0xff]
  %v28 = vld [vmem:[%s0 + $0x50] sm:$0xff]
  %v29 = vld [vmem:[%s0 + $0x58] sm:$0xff]
  %v30 = vpack.c.bf16 %v20, %v18
  %v31 = vpack.c.bf16 %v21, %v19
  %v32 = vpack.c.bf16 %v24, %v22
  %v33 = vpack.c.bf16 %v25, %v23
  %v34 = vpack.c.bf16 %v28, %v26
  %v35 = vpack.c.bf16 %v29, %v27
  %v36 = vld [vmem:[%s1] sm:$0xff]
  %v37 = vld [vmem:[%s1 + $0x8] sm:$0xff]
  %v38 = vld [vmem:[%s1 + $0x10] sm:$0xff]
  %v39 = vld [vmem:[%s1 + $0x18] sm:$0xff]
  %v40 = vld [vmem:[%s1 + $0x20] sm:$0xff]
  %v41 = vld [vmem:[%s1 + $0x28] sm:$0xff]
  %v42 = vld [vmem:[%s1 + $0x30] sm:$0xff]
  %v43 = vld [vmem:[%s1 + $0x38] sm:$0xff]
  %v44 = vld [vmem:[%s1 + $0x40] sm:$0xff]
  %v45 = vld [vmem:[%s1 + $0x48] sm:$0xff]
  %v46 = vld [vmem:[%s1 + $0x50] sm:$0xff]
  %v47 = vld [vmem:[%s1 + $0x58] sm:$0xff]
  %v48 = vld [vmem:[%s1 + $0x60] sm:$0xff]
  %v49 = vld [vmem:[%s1 + $0x68] sm:$0xff]
  %v50 = vld [vmem:[%s1 + $0x70] sm:$0xff]
  %v51 = vld [vmem:[%s1 + $0x78] sm:$0xff]
  %v52 = vld [vmem:[%s1 + $0x80] sm:$0xff]
  %v53 = vld [vmem:[%s1 + $0x88] sm:$0xff]
  %v54 = vld [vmem:[%s1 + $0x90] sm:$0xff]
  %v55 = vld [vmem:[%s1 + $0x98] sm:$0xff]
  %v56 = vld [vmem:[%s1 + $0xa0] sm:$0xff]
  %v57 = vld [vmem:[%s1 + $0xa8] sm:$0xff]
  %v58 = vld [vmem:[%s1 + $0xb0] sm:$0xff]
  %v59 = vld [vmem:[%s1 + $0xb8] sm:$0xff]
  %v60 = vld [vmem:[%s1 + $0xc0] sm:$0xff]
  %v61 = vld [vmem:[%s1 + $0xc8] sm:$0xff]
  %v62 = vld [vmem:[%s1 + $0xd0] sm:$0xff]
  %v63 = vld [vmem:[%s1 + $0xd8] sm:$0xff]
  %v64 = vld [vmem:[%s1 + $0xe0] sm:$0xff]
  %v65 = vld [vmem:[%s1 + $0xe8] sm:$0xff]
  %v66 = vld [vmem:[%s1 + $0xf0] sm:$0xff]
  %v67 = vld [vmem:[%s1 + $0xf8] sm:$0xff]
  %v68 = vpack.c.bf16 %v37, %v36
  %v69 = vpack.c.bf16 %v39, %v38
  %v70 = vpack.c.bf16 %v41, %v40
  %v71 = vpack.c.bf16 %v43, %v42
  %v72 = vpack.c.bf16 %v45, %v44
  %v73 = vpack.c.bf16 %v47, %v46
  %v74 = vpack.c.bf16 %v49, %v48
  %v75 = vpack.c.bf16 %v51, %v50
  %v76 = vpack.c.bf16 %v53, %v52
  %v77 = vpack.c.bf16 %v55, %v54
  %v78 = vpack.c.bf16 %v57, %v56
  %v79 = vpack.c.bf16 %v59, %v58
  %v80 = vpack.c.bf16 %v61, %v60
  %v81 = vpack.c.bf16 %v63, %v62
  %v82 = vpack.c.bf16 %v65, %v64
  %v83 = vpack.c.bf16 %v67, %v66
  %v84 = vld [vmem:[%s3] sm:$0xff]
  %v85 = vld [vmem:[%s3 + $0x8] sm:$0xff]
  %v86 = vld [vmem:[%s3 + $0x10] sm:$0xff]
  %v87 = vld [vmem:[%s3 + $0x18] sm:$0xff]
  %v88 = vld [vmem:[%s3 + $0x20] sm:$0xff]
  %v89 = vld [vmem:[%s3 + $0x28] sm:$0xff]
  %v90 = vmul.f32 %v84, 0.1
  %v91 = vmul.f32 %v85, 0.1
  %v92 = vmul.f32 %v86, 0.1
  %v93 = vmul.f32 %v87, 0.1
  %v94 = vmul.f32 %v88, 0.1
  %v95 = vmul.f32 %v89, 0.1
  %96 = vmatprep.subr.bf16.mxu0 0
  %97 = vmatpush1.bf16.msra.mxu0 %v68
  %98 = vmatprep.subr.bf16.mxu0 0
  %99 = vmatpush1.bf16.msra.mxu0 %v69
  %100 = vmatprep.subr.bf16.mxu0 0
  %101 = vmatpush1.bf16.msra.mxu0 %v70
  %102 = vmatprep.subr.bf16.mxu0 0
  %103 = vmatpush1.bf16.msra.mxu0 %v71
  %104 = vmatprep.subr.bf16.mxu0 0
  %105 = vmatpush1.bf16.msra.mxu0 %v72
  %106 = vmatprep.subr.bf16.mxu0 0
  %107 = vmatpush1.bf16.msra.mxu0 %v73
  %108 = vmatprep.subr.bf16.mxu0 0
  %109 = vmatpush1.bf16.msra.mxu0 %v74
  %110 = vmatprep.subr.bf16.mxu0 0
  %111 = vmatpush1.bf16.msra.mxu0 %v75
  %112 = vmatprep.subr.bf16.mxu0 0
  %113 = vmatpush1.bf16.msra.mxu0 %v76
  %114 = vmatprep.subr.bf16.mxu0 0
  %115 = vmatpush1.bf16.msra.mxu0 %v77
  %116 = vmatprep.subr.bf16.mxu0 0
  %117 = vmatpush1.bf16.msra.mxu0 %v78
  %118 = vmatprep.subr.bf16.mxu0 0
  %119 = vmatpush1.bf16.msra.mxu0 %v79
  %120 = vmatprep.subr.bf16.mxu0 0
  %121 = vmatpush1.bf16.msra.mxu0 %v80
  %122 = vmatprep.subr.bf16.mxu0 0
  %123 = vmatpush1.bf16.msra.mxu0 %v81
  %124 = vmatprep.subr.bf16.mxu0 0
  %125 = vmatpush1.bf16.msra.mxu0 %v82
  %126 = vmatprep.subr.bf16.mxu0 0
  %127 = vmatpush1.bf16.msra.mxu0 %v83
  %128 = vmatprep.mubr.bf16.mxu0 %v31
  %129 = vmatmul.mubr.bf16.gmra.mrb[0].mxu0 %v30
  %v130 = vpop.f32.mrb[0].mxu0
  %v131 = vadd.f32 %v90, %v130
  %v132 = vpop.f32.mrb[0].mxu0
  %v133 = vpop.f32.mrb[0].mxu0
  %v134 = vadd.f32 %v91, %v133
  %v135 = vpop.f32.mrb[0].mxu0
  %136 = vmatprep.mubr.bf16.mxu0 %v33
  %137 = vmatmul.mubr.bf16.gmra.mrb[0].mxu0 %v32
  %v138 = vpop.f32.mrb[0].mxu0
  %v139 = vadd.f32 %v92, %v138
  %v140 = vpop.f32.mrb[0].mxu0
  %v141 = vpop.f32.mrb[0].mxu0
  %v142 = vadd.f32 %v93, %v141
  %v143 = vpop.f32.mrb[0].mxu0
  %144 = vmatprep.mubr.bf16.mxu0 %v35
  %145 = vmatmul.mubr.bf16.gmra.mrb[0].mxu0 %v34
  %v146 = vpop.f32.mrb[0].mxu0
  %v147 = vadd.f32 %v94, %v146
  %v148 = vpop.f32.mrb[0].mxu0
  %v149 = vpop.f32.mrb[0].mxu0
  %v150 = vadd.f32 %v95, %v149
  %v151 = vpop.f32.mrb[0].mxu0
  %152 = vdwg.mxu0
  %v153 = vld [vmem:[%s2] sm:$0xff]
  %v154 = vlaneseq
  %v155 = vshrl.u32 %v154, 7
  %v156 = vsub.s32 0, %v155
  %v157 = vrot.slane %v153, %v156
  %v158 = vmul.f32 %v131, %v157
  %v159 = vmul.f32 %v134, %v157
  %v160 = vmul.f32 %v139, %v157
  %v161 = vlaneseq
  %v162 = vshrl.u32 %v161, 7
  %v163 = vsub.s32 1, %v162
  %v164 = vrot.slane %v153, %v163
  %v165 = vmul.f32 %v131, %v164
  %v166 = vmul.f32 %v134, %v164
  %v167 = vmul.f32 %v139, %v164
  %vm171 = vcmask 1046528
  %v172 = vrot.slane %v165, 1
  %v173 = vrot.slane %v166, 1
  %v174 = vsel %vm171, %v172, %v173
  %v175 = vrot.slane %v167, 1
  %v176 = vsel %vm171, %v173, %v175
  %v180 = vadd.f32 %v158, %v174
  %v181 = vadd.f32 %v159, %v176
  %v182 = vadd.f32 %v160, %v175
  %v183 = vlaneseq
  %v184 = vshrl.u32 %v183, 7
  %v185 = vsub.s32 2, %v184
  %v186 = vrot.slane %v153, %v185
  %v187 = vmul.f32 %v131, %v186
  %v188 = vmul.f32 %v134, %v186
  %v189 = vmul.f32 %v139, %v186
  %vm193 = vcmask 1045504
  %v194 = vrot.slane %v187, 2
  %v195 = vrot.slane %v188, 2
  %v196 = vsel %vm193, %v194, %v195
  %v197 = vrot.slane %v189, 2
  %v198 = vsel %vm193, %v195, %v197
  %v202 = vadd.f32 %v180, %v196
  %v203 = vadd.f32 %v181, %v198
  %v204 = vadd.f32 %v182, %v197
  %v205 = vlaneseq
  %v206 = vshrl.u32 %v205, 7
  %v207 = vsub.s32 3, %v206
  %v208 = vrot.slane %v153, %v207
  %v209 = vmul.f32 %v131, %v208
  %v210 = vmul.f32 %v134, %v208
  %v211 = vmul.f32 %v139, %v208
  %vm215 = vcmask 1044480
  %v216 = vrot.slane %v209, 3
  %v217 = vrot.slane %v210, 3
  %v218 = vsel %vm215, %v216, %v217
  %v219 = vrot.slane %v211, 3
  %v220 = vsel %vm215, %v217, %v219
  %v224 = vadd.f32 %v202, %v218
  %v225 = vadd.f32 %v203, %v220
  %v226 = vadd.f32 %v204, %v219
  %v227 = vlaneseq
  %v228 = vshrl.u32 %v227, 7
  %v229 = vsub.s32 4, %v228
  %v230 = vrot.slane %v153, %v229
  %v231 = vmul.f32 %v131, %v230
  %v232 = vmul.f32 %v134, %v230
  %v233 = vmul.f32 %v139, %v230
  %vm237 = vcmask 1043456
  %v238 = vrot.slane %v231, 4
  %v239 = vrot.slane %v232, 4
  %v240 = vsel %vm237, %v238, %v239
  %v241 = vrot.slane %v233, 4
  %v242 = vsel %vm237, %v239, %v241
  %v246 = vadd.f32 %v224, %v240
  %v247 = vadd.f32 %v225, %v242
  %v248 = vadd.f32 %v226, %v241
  %v249 = vlaneseq
  %v250 = vshrl.u32 %v249, 7
  %v251 = vsub.s32 5, %v250
  %v252 = vrot.slane %v153, %v251
  %v253 = vmul.f32 %v131, %v252
  %v254 = vmul.f32 %v134, %v252
  %v255 = vmul.f32 %v139, %v252
  %vm259 = vcmask 1042432
  %v260 = vrot.slane %v253, 5
  %v261 = vrot.slane %v254, 5
  %v262 = vsel %vm259, %v260, %v261
  %v263 = vrot.slane %v255, 5
  %v264 = vsel %vm259, %v261, %v263
  %v268 = vadd.f32 %v246, %v262
  %v269 = vadd.f32 %v247, %v264
  %v270 = vadd.f32 %v248, %v263
  %v271 = vlaneseq
  %v272 = vshrl.u32 %v271, 7
  %v273 = vsub.s32 6, %v272
  %v274 = vrot.slane %v153, %v273
  %v275 = vmul.f32 %v131, %v274
  %v276 = vmul.f32 %v134, %v274
  %v277 = vmul.f32 %v139, %v274
  %vm281 = vcmask 1041408
  %v282 = vrot.slane %v275, 6
  %v283 = vrot.slane %v276, 6
  %v284 = vsel %vm281, %v282, %v283
  %v285 = vrot.slane %v277, 6
  %v286 = vsel %vm281, %v283, %v285
  %v290 = vadd.f32 %v268, %v284
  %v291 = vadd.f32 %v269, %v286
  %v292 = vadd.f32 %v270, %v285
  %v293 = vlaneseq
  %v294 = vshrl.u32 %v293, 7
  %v295 = vsub.s32 7, %v294
  %v296 = vrot.slane %v153, %v295
  %v297 = vmul.f32 %v131, %v296
  %v298 = vmul.f32 %v134, %v296
  %v299 = vmul.f32 %v139, %v296
  %vm303 = vcmask 1040384
  %v304 = vrot.slane %v297, 7
  %v305 = vrot.slane %v298, 7
  %v306 = vsel %vm303, %v304, %v305
  %v307 = vrot.slane %v299, 7
  %v308 = vsel %vm303, %v305, %v307
  %v312 = vadd.f32 %v290, %v306
  %v313 = vadd.f32 %v291, %v308
  %v314 = vadd.f32 %v292, %v307
  %vm315 = vcmp.ne.f32.partialorder %v312, %v312
  %vm316 = vcmp.ne.f32.partialorder %v313, %v313
  %vm317 = vcmp.ne.f32.partialorder %v314, %v314
  %v318 = vsel %vm315, 1e-06, %v312
  %v319 = vsel %vm316, 1e-06, %v313
  %v320 = vsel %vm317, 1e-06, %v314
  %v321 = vmax.f32 %v318, -3.4028235e+38
  %v322 = vmax.f32 %v319, -3.4028235e+38
  %v323 = vmax.f32 %v320, -3.4028235e+38
  %v324 = vmin.f32 %v321, 3.4028235e+38
  %v325 = vmin.f32 %v322, 3.4028235e+38
  %v326 = vmin.f32 %v323, 3.4028235e+38
  %vm327 = vcmp.gt.f32.partialorder %v324, 20.0
  %vm328 = vcmp.gt.f32.partialorder %v325, 20.0
  %vm329 = vcmp.gt.f32.partialorder %v326, 20.0
  %v330 = vmin.f32 %v324, 20.0
  %v331 = vmin.f32 %v325, 20.0
  %v332 = vmin.f32 %v326, 20.0
  %v333 = vmul.f32 %v330, 1.442695
  %v334 = vpow.pop %v333
  %v335 = vmul.f32 %v331, 1.442695
  %v336 = vpow.pop %v335
  %v337 = vmul.f32 %v332, 1.442695
  %v338 = vpow.pop %v337
  %v339 = vadd.f32 %v334, 1.0
  %v340 = vlog2.pop %v339
  %v341 = vmul.f32 %v340, 0.6931472
  %v342 = vmul.f32 -0.5, %v334
  %v343 = vadd.f32 %v342, 1.0
  %v344 = vmul.f32 %v343, %v334
  %v345 = vand.u32 2147483647, %v334
  %vm346 = vcmp.lt.f32.partialorder %v345, 0.0004427343
  %v347 = vsel %vm346, %v344, %v341
  %v348 = vadd.f32 %v336, 1.0
  %v349 = vlog2.pop %v348
  %v350 = vmul.f32 %v349, 0.6931472
  %v351 = vmul.f32 -0.5, %v336
  %v352 = vadd.f32 %v351, 1.0
  %v353 = vmul.f32 %v352, %v336
  %v354 = vand.u32 2147483647, %v336
  %vm355 = vcmp.lt.f32.partialorder %v354, 0.0004427343
  %v356 = vsel %vm355, %v353, %v350
  %v357 = vadd.f32 %v338, 1.0
  %v358 = vlog2.pop %v357
  %v359 = vmul.f32 %v358, 0.6931472
  %v360 = vmul.f32 -0.5, %v338
  %v361 = vadd.f32 %v360, 1.0
  %v362 = vmul.f32 %v361, %v338
  %v363 = vand.u32 2147483647, %v338
  %vm364 = vcmp.lt.f32.partialorder %v363, 0.0004427343
  %v365 = vsel %vm364, %v362, %v359
  %v366 = vsel %vm327, %v324, %v347
  %v367 = vsel %vm328, %v325, %v356
  %v368 = vsel %vm329, %v326, %v365
  %vm369 = vcmask 261120
  %370 = vst.msk [vmem:[%s4] sm:$0xff] %vm369, %v366
  %371 = vst.msk [vmem:[%s4 + $0x8] sm:$0xff] %vm369, %v367
  %vm372 = vcmask 253952
  %373 = vst.msk [vmem:[%s4 + $0x10] sm:$0x1] %vm372, %v368
  %v374 = vmul.f32 %v142, %v157
  %v375 = vmul.f32 %v147, %v157
  %v376 = vmul.f32 %v150, %v157
  %v377 = vmul.f32 %v142, %v164
  %v378 = vmul.f32 %v147, %v164
  %v379 = vmul.f32 %v150, %v164
  %v383 = vrot.slane %v377, 1
  %v384 = vrot.slane %v378, 1
  %v385 = vsel %vm171, %v383, %v384
  %v386 = vrot.slane %v379, 1
  %v387 = vsel %vm171, %v384, %v386
  %v391 = vadd.f32 %v374, %v385
  %v392 = vadd.f32 %v375, %v387
  %v393 = vadd.f32 %v376, %v386
  %v394 = vmul.f32 %v142, %v186
  %v395 = vmul.f32 %v147, %v186
  %v396 = vmul.f32 %v150, %v186
  %v400 = vrot.slane %v394, 2
  %v401 = vrot.slane %v395, 2
  %v402 = vsel %vm193, %v400, %v401
  %v403 = vrot.slane %v396, 2
  %v404 = vsel %vm193, %v401, %v403
  %v408 = vadd.f32 %v391, %v402
  %v409 = vadd.f32 %v392, %v404
  %v410 = vadd.f32 %v393, %v403
  %v411 = vmul.f32 %v142, %v208
  %v412 = vmul.f32 %v147, %v208
  %v413 = vmul.f32 %v150, %v208
  %v417 = vrot.slane %v411, 3
  %v418 = vrot.slane %v412, 3
  %v419 = vsel %vm215, %v417, %v418
  %v420 = vrot.slane %v413, 3
  %v421 = vsel %vm215, %v418, %v420
  %v425 = vadd.f32 %v408, %v419
  %v426 = vadd.f32 %v409, %v421
  %v427 = vadd.f32 %v410, %v420
  %v428 = vmul.f32 %v142, %v230
  %v429 = vmul.f32 %v147, %v230
  %v430 = vmul.f32 %v150, %v230
  %v434 = vrot.slane %v428, 4
  %v435 = vrot.slane %v429, 4
  %v436 = vsel %vm237, %v434, %v435
  %v437 = vrot.slane %v430, 4
  %v438 = vsel %vm237, %v435, %v437
  %v442 = vadd.f32 %v425, %v436
  %v443 = vadd.f32 %v426, %v438
  %v444 = vadd.f32 %v427, %v437
  %v445 = vmul.f32 %v142, %v252
  %v446 = vmul.f32 %v147, %v252
  %v447 = vmul.f32 %v150, %v252
  %v451 = vrot.slane %v445, 5
  %v452 = vrot.slane %v446, 5
  %v453 = vsel %vm259, %v451, %v452
  %v454 = vrot.slane %v447, 5
  %v455 = vsel %vm259, %v452, %v454
  %v459 = vadd.f32 %v442, %v453
  %v460 = vadd.f32 %v443, %v455
  %v461 = vadd.f32 %v444, %v454
  %v462 = vmul.f32 %v142, %v274
  %v463 = vmul.f32 %v147, %v274
  %v464 = vmul.f32 %v150, %v274
  %v468 = vrot.slane %v462, 6
  %v469 = vrot.slane %v463, 6
  %v470 = vsel %vm281, %v468, %v469
  %v471 = vrot.slane %v464, 6
  %v472 = vsel %vm281, %v469, %v471
  %v476 = vadd.f32 %v459, %v470
  %v477 = vadd.f32 %v460, %v472
  %v478 = vadd.f32 %v461, %v471
  %v479 = vmul.f32 %v142, %v296
  %v480 = vmul.f32 %v147, %v296
  %v481 = vmul.f32 %v150, %v296
  %v485 = vrot.slane %v479, 7
  %v486 = vrot.slane %v480, 7
  %v487 = vsel %vm303, %v485, %v486
  %v488 = vrot.slane %v481, 7
  %v489 = vsel %vm303, %v486, %v488
  %v493 = vadd.f32 %v476, %v487
  %v494 = vadd.f32 %v477, %v489
  %v495 = vadd.f32 %v478, %v488
  %vm496 = vcmp.ne.f32.partialorder %v493, %v493
  %vm497 = vcmp.ne.f32.partialorder %v494, %v494
  %vm498 = vcmp.ne.f32.partialorder %v495, %v495
  %v499 = vsel %vm496, 1e-06, %v493
  %v500 = vsel %vm497, 1e-06, %v494
  %v501 = vsel %vm498, 1e-06, %v495
  %v502 = vmax.f32 %v499, -3.4028235e+38
  %v503 = vmax.f32 %v500, -3.4028235e+38
  %v504 = vmax.f32 %v501, -3.4028235e+38
  %v505 = vmin.f32 %v502, 3.4028235e+38
  %v506 = vmin.f32 %v503, 3.4028235e+38
  %v507 = vmin.f32 %v504, 3.4028235e+38
  %vm508 = vcmp.gt.f32.partialorder %v505, 20.0
  %vm509 = vcmp.gt.f32.partialorder %v506, 20.0
  %vm510 = vcmp.gt.f32.partialorder %v507, 20.0
  %v511 = vmin.f32 %v505, 20.0
  %v512 = vmin.f32 %v506, 20.0
  %v513 = vmin.f32 %v507, 20.0
  %v514 = vmul.f32 %v511, 1.442695
  %v515 = vpow.pop %v514
  %v516 = vmul.f32 %v512, 1.442695
  %v517 = vpow.pop %v516
  %v518 = vmul.f32 %v513, 1.442695
  %v519 = vpow.pop %v518
  %v520 = vadd.f32 %v515, 1.0
  %v521 = vlog2.pop %v520
  %v522 = vmul.f32 %v521, 0.6931472
  %v523 = vmul.f32 -0.5, %v515
  %v524 = vadd.f32 %v523, 1.0
  %v525 = vmul.f32 %v524, %v515
  %v526 = vand.u32 2147483647, %v515
  %vm527 = vcmp.lt.f32.partialorder %v526, 0.0004427343
  %v528 = vsel %vm527, %v525, %v522
  %v529 = vadd.f32 %v517, 1.0
  %v530 = vlog2.pop %v529
  %v531 = vmul.f32 %v530, 0.6931472
  %v532 = vmul.f32 -0.5, %v517
  %v533 = vadd.f32 %v532, 1.0
  %v534 = vmul.f32 %v533, %v517
  %v535 = vand.u32 2147483647, %v517
  %vm536 = vcmp.lt.f32.partialorder %v535, 0.0004427343
  %v537 = vsel %vm536, %v534, %v531
  %v538 = vadd.f32 %v519, 1.0
  %v539 = vlog2.pop %v538
  %v540 = vmul.f32 %v539, 0.6931472
  %v541 = vmul.f32 -0.5, %v519
  %v542 = vadd.f32 %v541, 1.0
  %v543 = vmul.f32 %v542, %v519
  %v544 = vand.u32 2147483647, %v519
  %vm545 = vcmp.lt.f32.partialorder %v544, 0.0004427343
  %v546 = vsel %vm545, %v543, %v540
  %v547 = vsel %vm508, %v505, %v528
  %v548 = vsel %vm509, %v506, %v537
  %v549 = vsel %vm510, %v507, %v546
  %550 = vst.msk [vmem:[%s4 + $0x11] sm:$0xff] %vm369, %v547
  %551 = vst.msk [vmem:[%s4 + $0x19] sm:$0xff] %vm369, %v548
  %552 = vst.msk [vmem:[%s4 + $0x21] sm:$0x1] %vm372, %v549
  // Predicated region
  $region18: #{tpu_custom_call.1} parent=0 // pred_check
    _
  $region19: #{tpu_custom_call.1} parent=0 // pred_check_branch
    %554 = sbr.rel (0) target = $region21
  $region20: #{tpu_custom_call.1} parent=0 // pred_region
    _
  $region21: #{tpu_custom_call.1} parent=0 // pred_fallthru
    _
  // Predicated region
  $region22: #{tpu_custom_call.1} parent=0 // pred_check
    _
  $region23: #{tpu_custom_call.1} parent=0 // pred_check_branch
    %556 = sbr.rel (0) target = $region25
  $region24: #{tpu_custom_call.1} parent=0 // pred_region
    _
  $region25: #{tpu_custom_call.1} parent=0 // pred_fallthru
    _

</llo_original>
